<compile_context>
chip_gen: v7x
topology: tpu7x:2x2x1
jax: 0.10.0
libtpu: 0.0.40
codegen_flags: <defaults>
</compile_context>

<pallas_src>
import jax
import jax.numpy as jnp
from jax.experimental import pallas as pl
from jax.experimental.pallas import tpu as pltpu

_MIB = 1024 * 1024


# ----------------------------------------------------------------------------
# Kernels
# ----------------------------------------------------------------------------
def _attention_kernel(x_ref, w1_ref, b1_ref, w2_ref, o_ref):
    # x_ref:  (Bt, S, D)  batch tile, storage dtype (params already cast to it)
    # w1_ref: (D, H), b1_ref: (1, H), w2_ref: (1, H)
    # o_ref:  (Bt, S, D)
    bt, s, d = x_ref.shape

    xm = x_ref[...].reshape(bt * s, d)               # merge leading dims

    # hidden = tanh(x @ W1 + b1): one MXU matmul with M = Bt*S, f32 accumulate.
    h = jnp.tanh(
        jnp.dot(xm, w1_ref[...], preferred_element_type=jnp.float32)
        + b1_ref[...]
    )                                                # (Bt*S, H) f32

    # Second linear has output width 1 -> VPU multiply + XLU lane reduce instead
    # of a lane-sparse N=1 MXU matmul.
    # TODO(synk): for small H on high-BW chips (v7x), check the bundle dump; if
    # EUP/VPU saturates, move this onto the otherwise-idle MXU instead.
    scores = jnp.sum(h * w2_ref[...], axis=-1, keepdims=True)   # (Bt*S, 1) f32
    scores = scores.reshape(bt, s, 1)

    # Softmax over the sequence axis (dim=1), max-stabilized, per batch element.
    # Exact division: the denominator is only Bt scalars, approx recip saves
    # nothing and costs normalization error.
    m = jnp.max(scores, axis=1, keepdims=True)                  # (Bt, 1, 1)
    e = jnp.exp(scores - m)                                     # (Bt, S, 1)
    denom = jnp.sum(e, axis=1, keepdims=True)                   # (Bt, 1, 1)
    weights = e / denom                                         # (Bt, S, 1) f32

    # out = x * weights: re-read x_ref (short live range, no f32 tile copy) and
    # multiply in the storage dtype.
    o_ref[...] = (x_ref[...] * weights.astype(x_ref.dtype)).astype(o_ref.dtype)


def _scores_kernel(x_ref, w1_ref, b1_ref, w2_ref, s_ref):
    # S-tiled fallback, pass 1: per-token scores.
    # x_ref: (1, St, D), s_ref: (1, St, 1) f32
    _, st, d = x_ref.shape
    xm = x_ref[...].reshape(st, d)
    h = jnp.tanh(
        jnp.dot(xm, w1_ref[...], preferred_element_type=jnp.float32)
        + b1_ref[...]
    )
    s_ref[...] = jnp.sum(h * w2_ref[...], axis=-1, keepdims=True).reshape(1, st, 1)


def _apply_weights_kernel(x_ref, w_ref, o_ref):
    # S-tiled fallback, pass 2: out = x * weights.
    o_ref[...] = (x_ref[...] * w_ref[...].astype(x_ref.dtype)).astype(o_ref.dtype)


# ----------------------------------------------------------------------------
# Generation-aware VMEM sizing
# ----------------------------------------------------------------------------
def _vmem_capacity_bytes():
    try:
        info = pltpu.get_tpu_info()
        cap = getattr(info, "vmem_capacity_bytes", None)
        if cap:
            return int(cap)
    except Exception:
        pass
    return 64 * _MIB  # conservative (v7x-class) when the query is unavailable


def _generation_config(vmem_budget_bytes):
    """Returns (block_budget_bytes, vmem_limit_cap_bytes, min_grid_steps)."""
    cap = _vmem_capacity_bytes()
    if cap >= 100 * _MIB:
        # v5e / v6e: 128 MiB physical VMEM, single TensorCore.  Big blocks win
        # (mem-bound); >=2 grid steps only needed for double buffering.
        budget, limit_cap, min_steps = 80 * _MIB, 100 * _MIB, 2
    else:
        # v7x class: 64 MiB physical VMEM, 2 TensorCores.  Smaller blocks, and
        # >=4 grid steps so each core gets >=2 steps (hides first fetch / last
        # writeback on both cores).
        budget, limit_cap, min_steps = 40 * _MIB, 52 * _MIB, 4
    if vmem_budget_bytes is not None:
        budget = min(int(vmem_budget_bytes), limit_cap)
    return budget, limit_cap, min_steps


def _vmem_limit_from_footprint(footprint, limit_cap):
    # Tie the Mosaic scoped-VMEM limit to the actual footprint, with headroom.
    return int(min(limit_cap, max(32 * _MIB, footprint * 5 // 4 + 8 * _MIB)))


# ----------------------------------------------------------------------------
# Wrappers
# ----------------------------------------------------------------------------
def attention_forward(x, w1, b1, w2, *, vmem_budget_bytes=None, seq_tile=None,
                      donate_x=False):
    """x: (B, S, D); w1: (D, H); b1: (H,); w2: (H, 1) -> (B, S, D)."""
    B, S, D = x.shape
    Din, H = w1.shape
    assert Din == D and w2.shape == (H, 1) and b1.shape == (H,)

    dtype = x.dtype
    db = jnp.dtype(dtype).itemsize

    # Cast parameters to the activation dtype (bf16 x -> bf16 weights on the
    # MXU; accumulation stays f32 inside the kernel).
    w1c = w1.astype(dtype)
    b1_2d = b1.reshape(1, H).astype(dtype)
    w2_row = w2.reshape(1, H).astype(dtype)   # (H, 1) -> (1, H) row for the VPU

    budget, limit_cap, min_steps = _generation_config(vmem_budget_bytes)

    # Honest per-batch-element VMEM footprint per grid step:
    #   double-buffered x in + double-buffered out + one compute temporary of
    #   the tile (5 * S*D*db), f32 hidden + h*w2 temporaries (8 * S*H), plus
    #   small softmax temporaries.  Resident params counted in `fixed`.
    per_batch = 5 * S * D * db + 8 * S * H + 32 * S
    fixed = 2 * (D * H + 2 * H) * db + 1 * _MIB

    if seq_tile is not None or per_batch > max(budget - fixed, 0):
        # Single (S, D) slice does not fit the block budget (or caller forced
        # the S-tiled path): two-pass fallback.
        return _attention_forward_s_tiled(
            x, w1c, b1_2d, w2_row,
            budget=budget, limit_cap=limit_cap, seq_tile=seq_tile)

    # Largest batch tile that fits, then keep >= min_steps grid steps when the
    # batch allows it (double buffering / per-TensorCore pipelining).
    bt = max(1, min(B, (budget - fixed) // per_batch))
    if pl.cdiv(B, bt) < min_steps:
        bt = max(1, pl.cdiv(B, min_steps))
    n_steps = pl.cdiv(B, bt)          # ragged last block is fine: softmax is
                                      # per batch element, OOB writes dropped

    footprint = fixed + bt * per_batch
    vmem_limit = _vmem_limit_from_footprint(footprint, limit_cap)

    # Advisory cost estimate so XLA schedules neighbors around this mem-bound op.
    flops = 2 * B * S * D * H + 3 * B * S * H + 8 * B * S + 2 * B * S * D
    transcendentals = B * S * (H + 1)
    bytes_accessed = 2 * B * S * D * db + (D * H + 2 * H) * db

    # NOTE: block last-two dims equal the full (S, D) extents, so the (8, 128)
    # constraint is satisfied for any S/D.
    # TODO(synk): for production D < 128, a wrapper-side lane fold of (S, D) ->
    # (S/k, k*D) would make output stores lane-dense; irrelevant when D >= 128.
    return pl.pallas_call(
        _attention_kernel,
        out_shape=jax.ShapeDtypeStruct((B, S, D), dtype),
        grid_spec=pltpu.PrefetchScalarGridSpec(
            num_scalar_prefetch=0,
            grid=(n_steps,),
            in_specs=[
                pl.BlockSpec((bt, S, D), lambda i: (i, 0, 0)),  # x batch tile
                pl.BlockSpec((D, H), lambda i: (0, 0)),         # W1 (resident)
                pl.BlockSpec((1, H), lambda i: (0, 0)),         # b1 (resident)
                pl.BlockSpec((1, H), lambda i: (0, 0)),         # w2 row (resident)
            ],
            out_specs=pl.BlockSpec((bt, S, D), lambda i: (i, 0, 0)),
        ),
        compiler_params=pltpu.CompilerParams(
            dimension_semantics=("parallel",),
            vmem_limit_bytes=vmem_limit,
        ),
        cost_estimate=pl.CostEstimate(
            flops=flops,
            transcendentals=transcendentals,
            bytes_accessed=bytes_accessed,
        ),
        input_output_aliases=({0: 0} if donate_x else {}),
    )(x, w1c, b1_2d, w2_row)


def _attention_forward_s_tiled(x, w1c, b1_2d, w2_row, *, budget, limit_cap,
                               seq_tile):
    """Two-pass S-tiled path for sequences whose (S, D) slice exceeds the block
    budget (critical on v7x's 64 MiB VMEM)."""
    B, S, D = x.shape
    H = w1c.shape[1]
    db = jnp.dtype(x.dtype).itemsize

    per_row = 5 * D * db + 8 * H + 64
    fixed = 2 * (D * H + 2 * H) * db + 1 * _MIB

    if seq_tile is not None:
        st = int(seq_tile)
    else:
        st = int(max(8, (budget - fixed) // per_row))
    if st >= S:
        st = S                      # full dim: always layout-legal
    else:
        st = max(8, (st // 8) * 8)  # tiled second-to-last dim must be %8

    grid = (B, pl.cdiv(S, st))      # ragged last S block handled by Pallas
    vmem_limit = _vmem_limit_from_footprint(fixed + st * per_row, limit_cap)
    cparams = pltpu.CompilerParams(
        dimension_semantics=("parallel", "parallel"),
        vmem_limit_bytes=vmem_limit,
    )

    # Pass 1: per-token scores.
    scores = pl.pallas_call(
        _scores_kernel,
        out_shape=jax.ShapeDtypeStruct((B, S, 1), jnp.float32),
        grid_spec=pltpu.PrefetchScalarGridSpec(
            num_scalar_prefetch=0,
            grid=grid,
            in_specs=[
                pl.BlockSpec((1, st, D), lambda b, s: (b, s, 0)),
                pl.BlockSpec((D, H), lambda b, s: (0, 0)),
                pl.BlockSpec((1, H), lambda b, s: (0, 0)),
                pl.BlockSpec((1, H), lambda b, s: (0, 0)),
            ],
            out_specs=pl.BlockSpec((1, st, 1), lambda b, s: (b, s, 0)),
        ),
        compiler_params=cparams,
    )(x, w1c, b1_2d, w2_row)

    # Softmax over the full sequence axis on the tiny (B, S, 1) side tensor.
    # TODO(synk): fold into a small Pallas pass if this XLA op ever shows in
    # profiles (traffic is only B*S*4 bytes each way).
    weights = jax.nn.softmax(scores, axis=1)

    # Pass 2: out = x * weights.
    return pl.pallas_call(
        _apply_weights_kernel,
        out_shape=jax.ShapeDtypeStruct((B, S, D), x.dtype),
        grid_spec=pltpu.PrefetchScalarGridSpec(
            num_scalar_prefetch=0,
            grid=grid,
            in_specs=[
                pl.BlockSpec((1, st, D), lambda b, s: (b, s, 0)),
                pl.BlockSpec((1, st, 1), lambda b, s: (b, s, 0)),
            ],
            out_specs=pl.BlockSpec((1, st, D), lambda b, s: (b, s, 0)),
        ),
        compiler_params=cparams,
    )(x, weights)


def attention_reference(x, w1, b1, w2):
    """Pure-JAX reference mirroring the PyTorch forward exactly."""
    h = jnp.tanh(jnp.einsum("bsd,dh->bsh", x, w1) + b1)       # (B, S, H)
    scores = jnp.einsum("bsh,ho->bso", h, w2)                 # (B, S, 1)
    weights = jax.nn.softmax(scores, axis=1)                  # softmax over S
    return x * weights


if __name__ == "__main__":
    key = jax.random.PRNGKey(0)
    kx, kw1, kb1, kw2 = jax.random.split(key, 4)

    D, H = 32, 16
    # nn.Linear(D, H) and nn.Linear(H, 1, bias=False), stored (in, out).
    w1 = jax.random.normal(kw1, (D, H), dtype=jnp.float32) * (1.0 / jnp.sqrt(D))
    b1 = jax.random.normal(kb1, (H,), dtype=jnp.float32) * 0.1
    w2 = jax.random.normal(kw2, (H, 1), dtype=jnp.float32) * (1.0 / jnp.sqrt(H))

    # --- main path, B=3 exercises the cdiv grid / ragged last batch block ---
    B, S = 3, 8
    x = jax.random.normal(kx, (B, S, D), dtype=jnp.float32)
    out = jax.block_until_ready(attention_forward(x, w1, b1, w2))
    ref = attention_reference(x, w1, b1, w2)
    assert out.shape == (B, S, D)
    # exact softmax division; residual tolerance covers MXU default-precision
    # matmul differences vs the XLA reference.
    assert jnp.allclose(out, ref, atol=1e-3, rtol=1e-3), "main path mismatch"

    # --- S-tiled fallback path (forced via seq_tile) ---
    S2 = 16
    x2 = jax.random.normal(kx, (2, S2, D), dtype=jnp.float32)
    out2 = jax.block_until_ready(attention_forward(x2, w1, b1, w2, seq_tile=8))
    ref2 = attention_reference(x2, w1, b1, w2)
    assert jnp.allclose(out2, ref2, atol=1e-3, rtol=1e-3), "s-tiled path mismatch"

    # --- bf16 activations (params cast to x.dtype wrapper-side) ---
    xb = x.astype(jnp.bfloat16)
    outb = jax.block_until_ready(attention_forward(xb, w1, b1, w2))
    refb = attention_reference(
        xb.astype(jnp.float32),
        w1.astype(jnp.bfloat16).astype(jnp.float32),
        b1.astype(jnp.bfloat16).astype(jnp.float32),
        w2.astype(jnp.bfloat16).astype(jnp.float32))
    assert jnp.allclose(outb.astype(jnp.float32), refb, atol=3e-2, rtol=3e-2), \
        "bf16 path mismatch"

    print("KERNEL_OK")
</pallas_src>

<mosaic_0001>
module attributes {stable_mosaic.version = 11 : i64} {
  func.func @_attention_kernel(%arg0: i32, %arg1: memref<1x8x32xf32, #tpu.memory_space<vmem>>, %arg2: memref<32x16xf32, #tpu.memory_space<vmem>>, %arg3: memref<1x16xf32, #tpu.memory_space<vmem>>, %arg4: memref<1x16xf32, #tpu.memory_space<vmem>>, %arg5: memref<1x8x32xf32, #tpu.memory_space<vmem>>) attributes {dimension_semantics = [#tpu.dimension_semantics<parallel>], iteration_bounds = array<i64: 3>, scalar_prefetch = 0 : i64, scratch_operands = 0 : i64, tpu.core_type = #tpu.core_type<tc>, window_params = [{transform_indices = @transform_0, window_bounds = array<i64: 1, 8, 32>}, {pipeline_mode = #tpu.pipeline_mode<synchronous>, transform_indices = @transform_1, window_bounds = array<i64: 32, 16>}, {pipeline_mode = #tpu.pipeline_mode<synchronous>, transform_indices = @transform_2, window_bounds = array<i64: 1, 16>}, {pipeline_mode = #tpu.pipeline_mode<synchronous>, transform_indices = @transform_3, window_bounds = array<i64: 1, 16>}, {transform_indices = @transform_4, window_bounds = array<i64: 1, 8, 32>}]} {
    %c0 = arith.constant 0 : index
    %c0_0 = arith.constant 0 : index
    %c0_1 = arith.constant 0 : index
    %0 = vector.load %arg1[%c0, %c0_0, %c0_1] : memref<1x8x32xf32, #tpu.memory_space<vmem>>, vector<1x8x32xf32>
    %1 = vector.shape_cast %0 : vector<1x8x32xf32> to vector<8x32xf32>
    %c0_2 = arith.constant 0 : index
    %c0_3 = arith.constant 0 : index
    %2 = vector.load %arg2[%c0_2, %c0_3] : memref<32x16xf32, #tpu.memory_space<vmem>>, vector<32x16xf32>
    %cst = arith.constant dense<0.000000e+00> : vector<8x16xf32>
    %3 = tpu.matmul %1, %2, %cst {dimension_numbers = #tpu.dot_dimension_numbers<[1], [0], [0], [1], [0, 0, 1, 1], [], []>} : vector<8x32xf32>, vector<32x16xf32>, vector<8x16xf32> -> vector<8x16xf32>
    %c0_4 = arith.constant 0 : index
    %c0_5 = arith.constant 0 : index
    %4 = vector.load %arg3[%c0_4, %c0_5] : memref<1x16xf32, #tpu.memory_space<vmem>>, vector<1x16xf32>
    %5 = vector.broadcast %4 : vector<1x16xf32> to vector<8x16xf32>
    %6 = arith.addf %3, %5 : vector<8x16xf32>
    %7 = math.tanh %6 : vector<8x16xf32>
    %c0_6 = arith.constant 0 : index
    %c0_7 = arith.constant 0 : index
    %8 = vector.load %arg4[%c0_6, %c0_7] : memref<1x16xf32, #tpu.memory_space<vmem>>, vector<1x16xf32>
    %9 = vector.broadcast %8 : vector<1x16xf32> to vector<8x16xf32>
    %10 = arith.mulf %7, %9 : vector<8x16xf32>
    %cst_8 = arith.constant dense<0.000000e+00> : vector<8xf32>
    %11 = vector.multi_reduction <add>, %10, %cst_8 [1] : vector<8x16xf32> to vector<8xf32>
    %12 = vector.shape_cast %11 : vector<8xf32> to vector<8x1xf32>
    %13 = vector.shape_cast %12 : vector<8x1xf32> to vector<1x8x1xf32>
    %cst_9 = arith.constant dense<0xFF800000> : vector<1x1xf32>
    %14 = vector.multi_reduction <maximumf>, %13, %cst_9 [1] : vector<1x8x1xf32> to vector<1x1xf32>
    %15 = vector.shape_cast %14 : vector<1x1xf32> to vector<1x1x1xf32>
    %16 = vector.broadcast %15 : vector<1x1x1xf32> to vector<1x8x1xf32>
    %17 = arith.subf %13, %16 : vector<1x8x1xf32>
    %18 = math.exp %17 : vector<1x8x1xf32>
    %cst_10 = arith.constant dense<0.000000e+00> : vector<1x1xf32>
    %19 = vector.multi_reduction <add>, %18, %cst_10 [1] : vector<1x8x1xf32> to vector<1x1xf32>
    %20 = vector.shape_cast %19 : vector<1x1xf32> to vector<1x1x1xf32>
    %21 = vector.broadcast %20 : vector<1x1x1xf32> to vector<1x8x1xf32>
    %22 = arith.divf %18, %21 : vector<1x8x1xf32>
    %c0_11 = arith.constant 0 : index
    %c0_12 = arith.constant 0 : index
    %c0_13 = arith.constant 0 : index
    %23 = vector.load %arg1[%c0_11, %c0_12, %c0_13] : memref<1x8x32xf32, #tpu.memory_space<vmem>>, vector<1x8x32xf32>
    %24 = vector.broadcast %22 : vector<1x8x1xf32> to vector<1x8x32xf32>
    %25 = arith.mulf %23, %24 : vector<1x8x32xf32>
    %c0_14 = arith.constant 0 : index
    %c0_15 = arith.constant 0 : index
    %c0_16 = arith.constant 0 : index
    %26 = vector.load %arg5[%c0_14, %c0_15, %c0_16] : memref<1x8x32xf32, #tpu.memory_space<vmem>>, vector<1x8x32xf32>
    tpu.vector_store %arg5[%c0_14, %c0_15, %c0_16], %25 {strides = array<i32>} : memref<1x8x32xf32, #tpu.memory_space<vmem>>, vector<1x8x32xf32>,
    return
  }
  func.func @transform_0(%arg0: i32) -> (i32, i32, i32) {
    %c0_i32 = arith.constant 0 : i32
    %c0_i32_0 = arith.constant 0 : i32
    %c0_i32_1 = arith.constant 0 : i32
    return %arg0, %c0_i32, %c0_i32_0 : i32, i32, i32
  }
  func.func @transform_1(%arg0: i32) -> (i32, i32) {
    %c0_i32 = arith.constant 0 : i32
    %c0_i32_0 = arith.constant 0 : i32
    %c0_i32_1 = arith.constant 0 : i32
    return %c0_i32, %c0_i32_0 : i32, i32
  }
  func.func @transform_2(%arg0: i32) -> (i32, i32) {
    %c0_i32 = arith.constant 0 : i32
    %c0_i32_0 = arith.constant 0 : i32
    %c0_i32_1 = arith.constant 0 : i32
    return %c0_i32, %c0_i32_0 : i32, i32
  }
  func.func @transform_3(%arg0: i32) -> (i32, i32) {
    %c0_i32 = arith.constant 0 : i32
    %c0_i32_0 = arith.constant 0 : i32
    %c0_i32_1 = arith.constant 0 : i32
    return %c0_i32, %c0_i32_0 : i32, i32
  }
  func.func @transform_4(%arg0: i32) -> (i32, i32, i32) {
    %c0_i32 = arith.constant 0 : i32
    %c0_i32_0 = arith.constant 0 : i32
    %c0_i32_1 = arith.constant 0 : i32
    return %arg0, %c0_i32, %c0_i32_0 : i32, i32, i32
  }
}

</mosaic_0001>

<llo_original>
// kernel: tpu_custom_call.1
$region0: #{tpu_custom_call.1}
  #allocation0 [shape = 'u32[]', space=smem, size = 0x4, offset = 0x4, fixed_abs, tag = 'smem constant byte address 0x4 - core index']
  #allocation1 [shape = 'u32[144,128]{1,0:T(1,128)}', space=vmem, size = 0x12000, scoped, tag = 'internal scratch']
  %s0 = inlined_call_operand.vmem [shape: f32[3,8,32], index: 0, kind: input, shape index: {}]
  %s1 = inlined_call_operand.vmem [shape: f32[32,16], index: 1, kind: input, shape index: {}]
  %s2 = inlined_call_operand.vmem [shape: f32[1,16], index: 2, kind: input, shape index: {}]
  %s3 = inlined_call_operand.vmem [shape: f32[1,16], index: 3, kind: input, shape index: {}]
  %s4 = inlined_call_operand.hbm [shape: f32[3,8,32], index: 4, kind: output, shape index: {}]
  %s5 = sld [smem:[#allocation0]]
  $region49: #{tpu_custom_call.1} parent=0
    _
  %s7 = ssub.s32 1, %s5
  %s8 = scalar_select 0, %s7, %s5
  $region1: #{tpu_custom_call.1} parent=0
    #allocation2 [shape = 'u8[8192]{0}', space=vmem, size = 0x2000, scoped, tag = 'output window, operand 0']
    #allocation3 [shape = 's32[2]{0}', space=sflag, size = 0x8, scoped, tag = 'scoped memory for tpu_custom_call.1']
    %9 = vsyncpa [#allocation3], 0
    %s10 = scalar_lea.sflag [#allocation3], 1
    %11 = vsyncpa %s10, 0
    loop: start=0, step=1, limit=5
    $region2: #{tpu_custom_call.1} parent=1 // loop_pre_header
      _
    $region3: #{tpu_custom_call.1} parent=1 // loop_header
      %s13 = sphi 0, %s17
      %p14 = scmp.ge.s32.totalorder %s13, 5
      %s23 = sphi 0, %s25
      %s26 = sphi 0, %s23
      %s27 = sphi 0, %s26
      %s43 = sphi 0, %s27
      %s47 = sphi 0, %s47
      %s49 = sphi 0, %s47
      %s50 = sphi 0, %s49
      %s64 = sphi 0, %s50
      %s68 = sphi 0, %s68
      %s70 = sphi 0, %s68
      %s71 = sphi 0, %s70
      %s85 = sphi 0, %s71
      %s89 = sphi 0, %s89
      %s91 = sphi 0, %s89
      %s92 = sphi 0, %s91
      %s106 = sphi 0, %s92
      %s112 = sphi 0, %s114
      %s115 = sphi 0, %s112
      %s116 = sphi 0, %s115
      %s132 = sphi 0, %s116
    $region4: #{tpu_custom_call.1} parent=1 // loop_header_branch
      %16 = sbr.rel (%p14) target = $region8
    $region5: #{tpu_custom_call.1} parent=1 // loop_body
      %s18 = ssub.s32 %s13, 1
      %s19 = ssub.s32 %s13, 2
      %s20 = sadd.s32 %s13, 1
      %s21 = ssub.s32 %s13, %s20
      %p22 = scmp.eq.s32.totalorder %s21, 0
      %s24 = sadd.s32 %s23, 1
      %s25 = scalar_select %p22, %s23, %s24
      %p28 = pneg %p22
      %p29 = scmp.eq.s32.totalorder %s13, 2
      %p30 = por %p28, %p29
      %p31 = scmp.ne.s32.totalorder %s23, %s26
      %p32 = scmp.eq.s32.totalorder %s13, 0
      %p33 = por %p31, %p32
      %p34 = scmp.ne.s32.totalorder %s23, %s26
      %p35 = scmp.eq.s32.totalorder %s18, 2
      %p36 = por %p34, %p35
      %p37 = scmp.ne.s32.totalorder %s26, %s27
      %p38 = scmp.eq.s32.totalorder %s18, 0
      %p39 = por %p37, %p38
      %p40 = scmp.ne.s32.totalorder %s26, %s27
      %p41 = scmp.eq.s32.totalorder %s19, 2
      %p42 = por %p40, %p41
      %p44 = scmp.ne.s32.totalorder %s27, %s43
      %p45 = scmp.eq.s32.totalorder %s19, 0
      %p46 = por %p44, %p45
      %s48 = sadd.s32 %s47, 1
      %p51 = scmp.eq.s32.totalorder %s13, 2
      %p52 = scmp.ne.s32.totalorder %s47, %s49
      %p53 = scmp.eq.s32.totalorder %s13, 0
      %p54 = por %p52, %p53
      %p55 = scmp.ne.s32.totalorder %s47, %s49
      %p56 = scmp.eq.s32.totalorder %s18, 2
      %p57 = por %p55, %p56
      %p58 = scmp.ne.s32.totalorder %s49, %s50
      %p59 = scmp.eq.s32.totalorder %s18, 0
      %p60 = por %p58, %p59
      %p61 = scmp.ne.s32.totalorder %s49, %s50
      %p62 = scmp.eq.s32.totalorder %s19, 2
      %p63 = por %p61, %p62
      %p65 = scmp.ne.s32.totalorder %s50, %s64
      %p66 = scmp.eq.s32.totalorder %s19, 0
      %p67 = por %p65, %p66
      %s69 = sadd.s32 %s68, 1
      %p72 = scmp.eq.s32.totalorder %s13, 2
      %p73 = scmp.ne.s32.totalorder %s68, %s70
      %p74 = scmp.eq.s32.totalorder %s13, 0
      %p75 = por %p73, %p74
      %p76 = scmp.ne.s32.totalorder %s68, %s70
      %p77 = scmp.eq.s32.totalorder %s18, 2
      %p78 = por %p76, %p77
      %p79 = scmp.ne.s32.totalorder %s70, %s71
      %p80 = scmp.eq.s32.totalorder %s18, 0
      %p81 = por %p79, %p80
      %p82 = scmp.ne.s32.totalorder %s70, %s71
      %p83 = scmp.eq.s32.totalorder %s19, 2
      %p84 = por %p82, %p83
      %p86 = scmp.ne.s32.totalorder %s71, %s85
      %p87 = scmp.eq.s32.totalorder %s19, 0
      %p88 = por %p86, %p87
      %s90 = sadd.s32 %s89, 1
      %p93 = scmp.eq.s32.totalorder %s13, 2
      %p94 = scmp.ne.s32.totalorder %s89, %s91
      %p95 = scmp.eq.s32.totalorder %s13, 0
      %p96 = por %p94, %p95
      %p97 = scmp.ne.s32.totalorder %s89, %s91
      %p98 = scmp.eq.s32.totalorder %s18, 2
      %p99 = por %p97, %p98
      %p100 = scmp.ne.s32.totalorder %s91, %s92
      %p101 = scmp.eq.s32.totalorder %s18, 0
      %p102 = por %p100, %p101
      %p103 = scmp.ne.s32.totalorder %s91, %s92
      %p104 = scmp.eq.s32.totalorder %s19, 2
      %p105 = por %p103, %p104
      %p107 = scmp.ne.s32.totalorder %s92, %s106
      %p108 = scmp.eq.s32.totalorder %s19, 0
      %p109 = por %p107, %p108
      %s110 = ssub.s32 %s13, %s20
      %p111 = scmp.eq.s32.totalorder %s110, 0
      %s113 = sadd.s32 %s112, 1
      %s114 = scalar_select %p111, %s112, %s113
      %p117 = pneg %p111
      %p118 = scmp.eq.s32.totalorder %s13, 2
      %p119 = por %p117, %p118
      %p120 = scmp.ne.s32.totalorder %s112, %s115
      %p121 = scmp.eq.s32.totalorder %s13, 0
      %p122 = por %p120, %p121
      %p123 = scmp.ne.s32.totalorder %s112, %s115
      %p124 = scmp.eq.s32.totalorder %s18, 2
      %p125 = por %p123, %p124
      %p126 = scmp.ne.s32.totalorder %s115, %s116
      %p127 = scmp.eq.s32.totalorder %s18, 0
      %p128 = por %p126, %p127
      %p129 = scmp.ne.s32.totalorder %s115, %s116
      %p130 = scmp.eq.s32.totalorder %s19, 2
      %p131 = por %p129, %p130
      %p133 = scmp.ne.s32.totalorder %s116, %s132
      %p134 = scmp.eq.s32.totalorder %s19, 0
      %p135 = por %p133, %p134
      %p136 = scmp.le.s32.totalorder 1, %s13
      %p137 = scmp.lt.s32.totalorder %s13, 4
      %p138 = pnand %p136, %p137
      %p139 = pneg %p138
      // Predicated region
      $region9: #{tpu_custom_call.1} parent=5 // pred_check
        _
      $region10: #{tpu_custom_call.1} parent=5 // pred_check_branch
        %141 = sbr.rel (%p138) target = $region12
      $region11: #{tpu_custom_call.1} parent=5 // pred_region
        %s142 = ssub.s32 %s13, 1
        // Predicated region
        $region13: #{tpu_custom_call.1} parent=11 // pred_check
          %p143 = pneg %p60
        $region14: #{tpu_custom_call.1} parent=11 // pred_check_branch
          %145 = sbr.rel (%p143) target = $region16
        $region15: #{tpu_custom_call.1} parent=11 // pred_region
          _
        $region16: #{tpu_custom_call.1} parent=11 // pred_fallthru
          _
        // Predicated region
        $region17: #{tpu_custom_call.1} parent=11 // pred_check
          %p146 = pneg %p81
        $region18: #{tpu_custom_call.1} parent=11 // pred_check_branch
          %148 = sbr.rel (%p146) target = $region20
        $region19: #{tpu_custom_call.1} parent=11 // pred_region
          _
        $region20: #{tpu_custom_call.1} parent=11 // pred_fallthru
          _
        // Predicated region
        $region21: #{tpu_custom_call.1} parent=11 // pred_check
          %p149 = pneg %p102
        $region22: #{tpu_custom_call.1} parent=11 // pred_check_branch
          %151 = sbr.rel (%p149) target = $region24
        $region23: #{tpu_custom_call.1} parent=11 // pred_region
          _
        $region24: #{tpu_custom_call.1} parent=11 // pred_fallthru
          _
      $region12: #{tpu_custom_call.1} parent=5 // pred_fallthru
        _
      %p152 = scmp.lt.s32.totalorder %s13, 3
      // Predicated region
      $region25: #{tpu_custom_call.1} parent=5 // pred_check
        %p153 = pneg %p152
      $region26: #{tpu_custom_call.1} parent=5 // pred_check_branch
        %155 = sbr.rel (%p153) target = $region28
      $region27: #{tpu_custom_call.1} parent=5 // pred_region
        // Predicated region
        $region29: #{tpu_custom_call.1} parent=27 // pred_check
          %p156 = pneg %p33
        $region30: #{tpu_custom_call.1} parent=27 // pred_check_branch
          %158 = sbr.rel (%p156) target = $region32
        $region31: #{tpu_custom_call.1} parent=27 // pred_region
          %p159 = scmp.lt.s32.totalorder %s13, 2
          %s160 = scalar_select %p159, %s13, 2
          %s161 = smul.addr %s160, 8
          %s162 = scalar_lea.vmem %s0, %s161
        $region32: #{tpu_custom_call.1} parent=27 // pred_fallthru
          _
      $region28: #{tpu_custom_call.1} parent=5 // pred_fallthru
        _
      %p163 = scmp.le.s32.totalorder 1, %s13
      %p164 = scmp.lt.s32.totalorder %s13, 4
      %p165 = pnand %p163, %p164
      %p166 = pneg %p165
      // Predicated region
      $region33: #{tpu_custom_call.1} parent=5 // pred_check
        _
      $region34: #{tpu_custom_call.1} parent=5 // pred_check_branch
        %168 = sbr.rel (%p165) target = $region36
      $region35: #{tpu_custom_call.1} parent=5 // pred_region
        %s169 = ssub.s32 %s13, 1
        %p170 = scmp.lt.s32.totalorder %s18, 2
        %s171 = scalar_select %p170, %s18, 2
        %s172 = smul.addr %s171, 8
        %s173 = scalar_lea.vmem %s0, %s172
        %p174 = pneg %p39
        %p175 = pneg %p36
        %p176 = pneg %p60
        %p177 = pneg %p57
        %p178 = pneg %p81
        %p179 = pneg %p78
        %p180 = pneg %p102
        %p181 = pneg %p99
        %p182 = pneg %p128
        %p183 = pneg %p125
        %s184 = sand.u32 %s115, 1
        %s185 = scalar_lea.sflag [#allocation3], %s184
        %s186 = sand.u32 %s115, 1
        %s187 = smul.addr %s186, 8
        %s188 = scalar_lea.vmem [#allocation2], %s187
        %p189 = scmp.lt.s32.totalorder %s18, 2
        %s190 = scalar_select %p189, %s18, 2
        %s191 = smul.addr %s190, 8
        %s192 = scalar_lea.vmem %s0, %s191
        %v193 = vld [vmem:[%s192] sm:$0xff]
        %v194 = vld [vmem:[%s1] sm:$0xff]
        %v195 = vld [vmem:[%s1 + $0x8] sm:$0xff]
        %v196 = vld [vmem:[%s1 + $0x10] sm:$0xff]
        %v197 = vld [vmem:[%s1 + $0x18] sm:$0xff]
        %v198 = vld [vmem:[%s2] sm:$0x1]
        %v200 = vlaneseq
        %v201 = vshrl.u32 %v200, 7
        %v202 = vsub.s32 0, %v201
        %v203 = vrot.slane %v198, %v202
        %vm205 = vcmask 261120
        %v207 = vsel %vm205, %v193, 0
        %209 = vmatprep.subr.mxu0 0.0
        %210 = vmatpush1.msra.mxu0 %v194
        %211 = vmatprep.subr.mxu0 0.0
        %212 = vmatpush1.msra.mxu0 %v195
        %213 = vmatprep.subr.mxu0 0.0
        %214 = vmatpush1.msra.mxu0 %v196
        %215 = vmatprep.subr.mxu0 0.0
        %216 = vmatpush1.msra.mxu0 %v197
        %217 = vmatprep.subr.mxu0 0.0
        %218 = vmatpush1.msra.mxu0 0.0
        %219 = vmatprep.subr.mxu0 0.0
        %220 = vmatpush1.msra.mxu0 0.0
        %221 = vmatprep.subr.mxu0 0.0
        %222 = vmatpush1.msra.mxu0 0.0
        %223 = vmatprep.subr.mxu0 0.0
        %224 = vmatpush1.msra.mxu0 0.0
        %225 = vmatprep.subr.mxu0 0.0
        %226 = vmatpush1.msra.mxu0 0.0
        %227 = vmatprep.subr.mxu0 0.0
        %228 = vmatpush1.msra.mxu0 0.0
        %229 = vmatprep.subr.mxu0 0.0
        %230 = vmatpush1.msra.mxu0 0.0
        %231 = vmatprep.subr.mxu0 0.0
        %232 = vmatpush1.msra.mxu0 0.0
        %233 = vmatprep.subr.mxu0 0.0
        %234 = vmatpush1.msra.mxu0 0.0
        %235 = vmatprep.subr.mxu0 0.0
        %236 = vmatpush1.msra.mxu0 0.0
        %237 = vmatprep.subr.mxu0 0.0
        %238 = vmatpush1.msra.mxu0 0.0
        %239 = vmatprep.subr.mxu0 0.0
        %240 = vmatpush1.msra.mxu0 0.0
        %241 = vmatprep.subr.mxu0 0.0
        %242 = vmatpush1.msra.mxu0 0.0
        %243 = vmatprep.subr.mxu0 0.0
        %244 = vmatpush1.msra.mxu0 0.0
        %245 = vmatprep.subr.mxu0 0.0
        %246 = vmatpush1.msra.mxu0 0.0
        %247 = vmatprep.subr.mxu0 0.0
        %248 = vmatpush1.msra.mxu0 0.0
        %249 = vmatprep.subr.mxu0 0.0
        %250 = vmatpush1.msra.mxu0 0.0
        %251 = vmatprep.subr.mxu0 0.0
        %252 = vmatpush1.msra.mxu0 0.0
        %253 = vmatprep.subr.mxu0 0.0
        %254 = vmatpush1.msra.mxu0 0.0
        %255 = vmatprep.subr.mxu0 0.0
        %256 = vmatpush1.msra.mxu0 0.0
        %257 = vmatprep.subr.mxu0 0.0
        %258 = vmatpush1.msra.mxu0 0.0
        %259 = vmatprep.subr.mxu0 0.0
        %260 = vmatpush1.msra.mxu0 0.0
        %261 = vmatprep.subr.mxu0 0.0
        %262 = vmatpush1.msra.mxu0 0.0
        %263 = vmatprep.subr.mxu0 0.0
        %264 = vmatpush1.msra.mxu0 0.0
        %265 = vmatprep.subr.mxu0 0.0
        %266 = vmatpush1.msra.mxu0 0.0
        %267 = vmatprep.subr.mxu0 0.0
        %268 = vmatpush1.msra.mxu0 0.0
        %269 = vmatprep.subr.mxu0 0.0
        %270 = vmatpush1.msra.mxu0 0.0
        %271 = vmatprep.subr.mxu0 0.0
        %272 = vmatpush1.msra.mxu0 0.0
        %273 = vmatprep.mubr.f32.mxu0 0.0
        %274 = vmatmul.mubr.f32.gmra.mrb[0].mxu0 %v207
        %v275 = vpop.f32.mrb[0].mxu0
        %v276 = vadd.f32 %v203, %v275
        %v277 = vpop.f32.mrb[0].mxu0
        %278 = vdwg.mxu0
        %v279 = vtanh.pop %v276
        %v280 = vld [vmem:[%s3] sm:$0x1]
        %v282 = vlaneseq
        %v283 = vshrl.u32 %v282, 7
        %v284 = vsub.s32 0, %v283
        %v285 = vrot.slane %v280, %v284
        %v287 = vmul.f32 %v279, %v285
        %vm288 = vcmask 130048
        %v289 = vsel %vm288, %v287, 0.0
        %290 = vadd.xlane.f32.xlu0 %v289
        %v291 = vpop.xlane.xlu0 %290
        %v292 = vrot.slane %v291, 4
        %v293 = vmax.f32 %v291, %v292
        %v294 = vrot.slane %v293, 2
        %v295 = vmax.f32 %v293, %v294
        %v296 = vrot.slane %v295, 1
        %v297 = vmax.f32 %v295, %v296
        %v298 = vsub.f32 %v291, %v297
        %v299 = vmul.f32 %v298, 1.442695
        %v300 = vpow.pop %v299
        %v301 = vrot.slane %v300, 4
        %v302 = vadd.f32 %v300, %v301
        %v303 = vrot.slane %v302, 2
        %v304 = vadd.f32 %v302, %v303
        %v305 = vrot.slane %v304, 1
        %v306 = vadd.f32 %v304, %v305
        %v307 = vrcp.pop %v306
        %v308 = vmul.f32 %v300, %v307
        %v309 = vmul.f32 %v193, %v308
        %310 = vst.msk [vmem:[%s188] sm:$0xff] %vm205, %v309
        %s311 = sand.u32 %s115, 1
        %s312 = scalar_lea.sflag [#allocation3], %s311
        %s313 = sand.u32 %s115, 1
        %s314 = smul.addr %s313, 8
        %s315 = scalar_lea.vmem [#allocation2], %s314
        // Predicated region
        $region37: #{tpu_custom_call.1} parent=35 // pred_check
          %p316 = pneg %p125
        $region38: #{tpu_custom_call.1} parent=35 // pred_check_branch
          %318 = sbr.rel (%p316) target = $region40
        $region39: #{tpu_custom_call.1} parent=35 // pred_region
          %s320 = ssub.s32 128, 128
          %321 = vsyncadd %s312, %s320
          %s322 = smul.addr %s18, 128
          %s323 = scalar_lea.hbm %s4, %s322
          %s325 = sshll.u32 %s315, 4
          %s326 = int_to_ptr.vmem [resolvable:$true] %s325
          %328 = dma.vmem_to_hbm [thread:$0]  %s326, 128, %s323, %s312
        $region40: #{tpu_custom_call.1} parent=35 // pred_fallthru
          _
      $region36: #{tpu_custom_call.1} parent=5 // pred_fallthru
        _
      %p329 = scmp.le.s32.totalorder 2, %s13
      // Predicated region
      $region41: #{tpu_custom_call.1} parent=5 // pred_check
        %p330 = pneg %p329
      $region42: #{tpu_custom_call.1} parent=5 // pred_check_branch
        %332 = sbr.rel (%p330) target = $region44
      $region43: #{tpu_custom_call.1} parent=5 // pred_region
        %s333 = ssub.s32 %s13, 2
        // Predicated region
        $region45: #{tpu_custom_call.1} parent=43 // pred_check
          %p334 = pneg %p131
        $region46: #{tpu_custom_call.1} parent=43 // pred_check_branch
          %336 = sbr.rel (%p334) target = $region48
        $region47: #{tpu_custom_call.1} parent=43 // pred_region
          %s337 = sand.u32 %s116, 1
          %s338 = scalar_lea.sflag [#allocation3], %s337
          %s339 = sand.u32 %s116, 1
          %s340 = smul.addr %s339, 8
          %s341 = scalar_lea.vmem [#allocation2], %s340
          %342 = dma.done %s338, 128
        $region48: #{tpu_custom_call.1} parent=43 // pred_fallthru
          _
      $region44: #{tpu_custom_call.1} parent=5 // pred_fallthru
        _
    $region6: #{tpu_custom_call.1} parent=1 // loop_footer
      %s17 = sadd.s32 1, %s13
    $region7: #{tpu_custom_call.1} parent=1 // loop_footer_branch
      %12 = sbr.rel target = $region3
    $region8: #{tpu_custom_call.1} parent=1 // loop_exit
      _
    %343 = vsyncpa [#allocation3], 1
    %s344 = scalar_lea.sflag [#allocation3], 1
    %345 = vsyncpa %s344, 1

</llo_original>
